<compile_context>
chip_gen: v7x
topology: tpu7x:2x2x1
jax: 0.10.0
libtpu: 0.0.40
codegen_flags: <defaults>
</compile_context>

<pallas_src>
import functools

import jax
import jax.numpy as jnp
from jax.experimental import pallas as pl
from jax.experimental.pallas import tpu as pltpu


def _semantic_attention_kernel(z_ref, w_ref, b_ref, qt_ref, out_ref, *, B, S, D, Q):
    z = z_ref[...]                      # (B, S, D), native dtype
    W = w_ref[...]                      # (D, Q)
    bias = b_ref[...]                   # (1, Q)
    qt = qt_ref[...]                    # (1, Q)   (q transposed in the wrapper)

    # ---- Wh = tanh(z @ W + b): one batched MXU matmul on a (B*S, D) slab ----
    wh = jnp.tanh(
        jnp.dot(z.reshape(B * S, D), W, preferred_element_type=jnp.float32) + bias
    )                                                           # (B*S, Q) f32

    # ---- w = Wh @ q (N=1 output): VPU multiply + lane reduce, not MXU ----
    w = jnp.sum(wh.reshape(B, S, Q) * qt, axis=-1, keepdims=True)  # (B, S, 1)

    # ---- wm = w.mean(0) ----
    wmean = jnp.sum(w, axis=0) * jnp.float32(1.0 / B)              # (S, 1)

    # ---- beta = softmax(wm, dim=1) ----
    if wmean.shape[1] == 1:
        # softmax over a size-1 axis is identically 1.0 (exactly what
        # F.softmax(w, dim=1) returns for an (S, 1) tensor); skip the dead
        # max/exp/divide. NOTE: the original module may have intended dim=0 —
        # we faithfully mirror dim=1 as written.
        beta = jnp.ones_like(wmean)
    else:
        m = jnp.max(wmean, axis=1, keepdims=True)
        e = jnp.exp(wmean - m)
        beta = e * pl.reciprocal(jnp.sum(e, axis=1, keepdims=True), approx=False)

    # ---- out = (beta * z).sum(1): one vectorized reduce + full-block store ----
    weighted = z * beta.astype(z.dtype)[None, :, :]                # (B, S, D)
    out_ref[...] = jnp.sum(weighted, axis=1).astype(out_ref.dtype)  # (B, D)


def semantic_attention(z, weight, bias, q):
    B, S, D = z.shape
    Q = weight.shape[1]
    # Present q lane-major (1, Q) so the kernel does a broadcast-multiply
    # instead of a lane<->sublane relayout.
    qt = q.reshape(1, Q)
    kernel = functools.partial(_semantic_attention_kernel, B=B, S=S, D=D, Q=Q)
    return pl.pallas_call(
        kernel,
        out_shape=jax.ShapeDtypeStruct((B, D), z.dtype),
        in_specs=[pl.BlockSpec(memory_space=pltpu.MemorySpace.VMEM)] * 4,
        out_specs=pl.BlockSpec(memory_space=pltpu.MemorySpace.VMEM),
    )(z, weight, bias, qt)


def _xavier_uniform(key, shape, gain):
    # torch.nn.init.xavier_uniform_ for a 2-D tensor: fan_out, fan_in = shape
    fan_out, fan_in = shape
    bound = gain * (6.0 / (fan_in + fan_out)) ** 0.5
    return jax.random.uniform(key, shape, jnp.float32, -bound, bound)


def _reference(z, W, b, q):
    wh = jnp.tanh(z @ W + b)                 # (B, S, Q)
    w = wh @ q                               # (B, S, 1)
    wm = w.mean(0)                           # (S, 1)
    beta = jax.nn.softmax(wm, axis=1)        # (S, 1)
    return (beta[None] * z).sum(1)           # (B, D)


if __name__ == "__main__":
    B, S, D, Q = 4, 8, 32, 16                # small shapes consistent with the module

    key = jax.random.PRNGKey(0)
    kz, kw, kb, kq = jax.random.split(key, 4)

    z = jax.random.normal(kz, (B, S, D), dtype=jnp.float32)
    weight = _xavier_uniform(kw, (D, Q), gain=1.667)
    bias = _xavier_uniform(kb, (1, Q), gain=1.667)
    qvec = _xavier_uniform(kq, (Q, 1), gain=1.667)

    out = semantic_attention(z, weight, bias, qvec)
    out = jax.block_until_ready(out)

    ref = _reference(z, weight, bias, qvec)
    assert out.shape == (B, D)
    assert jnp.allclose(out, ref, atol=1e-5, rtol=1e-5), (
        f"max abs err {jnp.max(jnp.abs(out - ref))}"
    )
    print("KERNEL_OK")
</pallas_src>

<mosaic_0001>
module attributes {stable_mosaic.version = 11 : i64} {
  func.func @_semantic_attention_kernel(%arg0: memref<4x8x32xf32, #tpu.memory_space<vmem>>, %arg1: memref<32x16xf32, #tpu.memory_space<vmem>>, %arg2: memref<1x16xf32, #tpu.memory_space<vmem>>, %arg3: memref<1x16xf32, #tpu.memory_space<vmem>>, %arg4: memref<4x32xf32, #tpu.memory_space<vmem>>) attributes {dimension_semantics = [], scalar_prefetch = 0 : i64, scratch_operands = 0 : i64, tpu.core_type = #tpu.core_type<tc>} {
    %c0 = arith.constant 0 : index
    %c0_0 = arith.constant 0 : index
    %c0_1 = arith.constant 0 : index
    %0 = vector.load %arg0[%c0, %c0_0, %c0_1] : memref<4x8x32xf32, #tpu.memory_space<vmem>>, vector<4x8x32xf32>
    %cst = arith.constant 1.000000e+00 : f32
    %1 = vector.broadcast %cst : f32 to vector<8x1xf32>
    %2 = vector.shape_cast %1 : vector<8x1xf32> to vector<1x8x1xf32>
    %3 = vector.broadcast %2 : vector<1x8x1xf32> to vector<4x8x32xf32>
    %4 = arith.mulf %0, %3 : vector<4x8x32xf32>
    %cst_2 = arith.constant dense<0.000000e+00> : vector<4x32xf32>
    %5 = vector.multi_reduction <add>, %4, %cst_2 [1] : vector<4x8x32xf32> to vector<4x32xf32>
    %c0_3 = arith.constant 0 : index
    %c0_4 = arith.constant 0 : index
    %6 = vector.load %arg4[%c0_3, %c0_4] : memref<4x32xf32, #tpu.memory_space<vmem>>, vector<4x32xf32>
    tpu.vector_store %arg4[%c0_3, %c0_4], %5 {strides = array<i32>} : memref<4x32xf32, #tpu.memory_space<vmem>>, vector<4x32xf32>,
    return
  }
}

</mosaic_0001>

<llo_original>
// kernel: tpu_custom_call.1
$region0: #{tpu_custom_call.1}
  #allocation0 [shape = 'u32[]', space=smem, size = 0x4, offset = 0x4, fixed_abs, tag = 'smem constant byte address 0x4 - core index']
  #allocation1 [shape = 'u32[144,128]{1,0:T(1,128)}', space=vmem, size = 0x12000, scoped, tag = 'internal scratch']
  %s0 = inlined_call_operand.vmem [shape: f32[4,8,32], index: 0, kind: input, shape index: {}]
  %s1 = inlined_call_operand.vmem [shape: f32[32,16], index: 1, kind: input, shape index: {}]
  %s2 = inlined_call_operand.vmem [shape: f32[1,16], index: 2, kind: input, shape index: {}]
  %s3 = inlined_call_operand.vmem [shape: f32[1,16], index: 3, kind: input, shape index: {}]
  %s4 = inlined_call_operand.hbm [shape: f32[4,32], index: 4, kind: output, shape index: {}]
  %s5 = sld [smem:[#allocation0]]
  $region26: #{tpu_custom_call.1} parent=0
    _
  %s7 = ssub.s32 1, %s5
  %s8 = scalar_select 0, %s7, %s5
  $region1: #{tpu_custom_call.1} parent=0
    #allocation2 [shape = 'u8[2048]{0}', space=vmem, size = 0x800, scoped, tag = 'output window, operand 0, single buffered']
    #allocation3 [shape = 's32[1]{0}', space=sflag, size = 0x4, scoped, tag = 'scoped memory for tpu_custom_call.1']
    %9 = vsyncpa [#allocation3], 0
    // Predicated region
    $region2: #{tpu_custom_call.1} parent=1 // pred_check
      _
    $region3: #{tpu_custom_call.1} parent=1 // pred_check_branch
      %11 = sbr.rel (0) target = $region5
    $region4: #{tpu_custom_call.1} parent=1 // pred_region
      _
    $region5: #{tpu_custom_call.1} parent=1 // pred_fallthru
      _
    // Predicated region
    $region6: #{tpu_custom_call.1} parent=1 // pred_check
      _
    $region7: #{tpu_custom_call.1} parent=1 // pred_check_branch
      %13 = sbr.rel (0) target = $region9
    $region8: #{tpu_custom_call.1} parent=1 // pred_region
      _
    $region9: #{tpu_custom_call.1} parent=1 // pred_fallthru
      _
    // Predicated region
    $region10: #{tpu_custom_call.1} parent=1 // pred_check
      _
    $region11: #{tpu_custom_call.1} parent=1 // pred_check_branch
      %15 = sbr.rel (0) target = $region13
    $region12: #{tpu_custom_call.1} parent=1 // pred_region
      _
    $region13: #{tpu_custom_call.1} parent=1 // pred_fallthru
      _
    // Predicated region
    $region14: #{tpu_custom_call.1} parent=1 // pred_check
      _
    $region15: #{tpu_custom_call.1} parent=1 // pred_check_branch
      %17 = sbr.rel (0) target = $region17
    $region16: #{tpu_custom_call.1} parent=1 // pred_region
      _
    $region17: #{tpu_custom_call.1} parent=1 // pred_fallthru
      _
    %v18 = vld [vmem:[%s0] sm:$0xff]
    %v19 = vld [vmem:[%s0 + $0x8] sm:$0xff]
    %v20 = vld [vmem:[%s0 + $0x10] sm:$0xff]
    %v21 = vld [vmem:[%s0 + $0x18] sm:$0xff]
    %vm22 = vcmask 261120
    %v23 = vsel %vm22, %v18, 0.0
    %v24 = vrot.slane %v23, 4
    %v25 = vadd.f32 %v23, %v24
    %v26 = vrot.slane %v25, 2
    %v27 = vadd.f32 %v25, %v26
    %v28 = vrot.slane %v27, 1
    %v29 = vadd.f32 %v27, %v28
    %v30 = vsel %vm22, %v19, 0.0
    %v31 = vrot.slane %v30, 4
    %v32 = vadd.f32 %v30, %v31
    %v33 = vrot.slane %v32, 2
    %v34 = vadd.f32 %v32, %v33
    %v35 = vrot.slane %v34, 1
    %v36 = vadd.f32 %v34, %v35
    %v37 = vsel %vm22, %v20, 0.0
    %v38 = vrot.slane %v37, 4
    %v39 = vadd.f32 %v37, %v38
    %v40 = vrot.slane %v39, 2
    %v41 = vadd.f32 %v39, %v40
    %v42 = vrot.slane %v41, 1
    %v43 = vadd.f32 %v41, %v42
    %v44 = vsel %vm22, %v21, 0.0
    %v45 = vrot.slane %v44, 4
    %v46 = vadd.f32 %v44, %v45
    %v47 = vrot.slane %v46, 2
    %v48 = vadd.f32 %v46, %v47
    %v49 = vrot.slane %v48, 1
    %v50 = vadd.f32 %v48, %v49
    %vm55 = vcmask 1041409
    %v56 = vsel %vm55, %v36, %v29
    %vm57 = vcmask 1042434
    %v58 = vsel %vm57, %v43, %v56
    %vm59 = vcmask 1043459
    %v60 = vsel %vm59, %v50, %v58
    %vm62 = vcmask 257024
    %63 = vst.msk [vmem:[#allocation2] sm:$0xf] %vm62, %v60
    // Predicated region
    $region18: #{tpu_custom_call.1} parent=1 // pred_check
      _
    $region19: #{tpu_custom_call.1} parent=1 // pred_check_branch
      %65 = sbr.rel (0) target = $region21
    $region20: #{tpu_custom_call.1} parent=1 // pred_region
      %s67 = ssub.s32 64, 64
      %68 = vsyncadd [#allocation3], %s67
      %s70 = sshll.u32 [#allocation2], 4
      %s71 = int_to_ptr.vmem [resolvable:$true] %s70
      %73 = dma.vmem_to_hbm [thread:$0]  %s71, 64, %s4, [#allocation3]
    $region21: #{tpu_custom_call.1} parent=1 // pred_fallthru
      _
    // Predicated region
    $region22: #{tpu_custom_call.1} parent=1 // pred_check
      _
    $region23: #{tpu_custom_call.1} parent=1 // pred_check_branch
      %75 = sbr.rel (0) target = $region25
    $region24: #{tpu_custom_call.1} parent=1 // pred_region
      %76 = dma.done [#allocation3], 64
    $region25: #{tpu_custom_call.1} parent=1 // pred_fallthru
      _
    %77 = vsyncpa [#allocation3], 1

</llo_original>
